<compile_context>
chip_gen: v7x
topology: tpu7x:2x2x1
jax: 0.10.0
libtpu: 0.0.40
codegen_flags: <defaults>
</compile_context>

<pallas_src>
import jax
import jax.numpy as jnp
from jax.experimental import pallas as pl
from jax.experimental.pallas import tpu as pltpu


def _round_up(x, m):
    return (x + m - 1) // m * m


def _pad2d(a, rows, cols):
    r, c = a.shape
    return jnp.pad(a, ((0, rows - r), (0, cols - c)))


def _vmem_budget_bytes():
    """Generation-aware VMEM budget: physical capacity minus ~8 MiB headroom."""
    try:
        cap = int(pltpu.get_tpu_info().vmem_capacity_bytes)
    except Exception:
        cap = 64 << 20  # conservative fallback: v7x-sized per-TC VMEM
    return max(cap - (8 << 20), 16 << 20)


def ffnn_kernel(x_ref, w1_ref, b1_ref, w2_ref, b2_ref, w3_ref, b3_ref,
                o_ref, h2_ref):
    j = pl.program_id(1)

    # Layers 1-2 are shared across all vocab tiles of this token tile: compute
    # once (j == 0) and keep the bf16 result resident in VMEM scratch.
    # NOTE: this reuse relies on j being the innermost *sequential*
    # ("arbitrary") grid axis, so every token tile sees j == 0 first.
    # Do not reorder the grid or mark the vocab axis "parallel".
    @pl.when(j == 0)
    def _():
        h1 = jnp.dot(x_ref[...], w1_ref[...],
                     preferred_element_type=jnp.float32)
        h1 = jnp.maximum(h1 + b1_ref[...], 0.0).astype(jnp.bfloat16)
        h2 = jnp.dot(h1, w2_ref[...], preferred_element_type=jnp.float32)
        h2_ref[...] = jnp.maximum(h2 + b2_ref[...], 0.0).astype(h2_ref.dtype)

    # Layer 3: stream one bf16 vocab tile of W3 per grid step (pure MXU matmul
    # with f32 accumulation), add the f32 bias, cast once on the store.
    out = jnp.dot(h2_ref[...], w3_ref[...], preferred_element_type=jnp.float32)
    o_ref[...] = (out + b3_ref[...]).astype(o_ref.dtype)


def ffnn_forward(x, w1, b1, w2, b2, w3, b3, *,
                 tm=512, tn=1024, out_dtype=jnp.bfloat16):
    """x: (N, d_in); w*: (in, out); b*: (1, out). Returns (N, vocab) logits.

    tm: token tile (multiple of 8).   Default 512 to amortize W3 streaming.
    tn: vocab tile (multiple of 128). Default 1024 keeps stores lane-dense.
    out_dtype: bf16 by default (production); pass f32 for tight checks.
    """
    n, d_in = x.shape
    d_h1 = w1.shape[1]
    d_h2 = w2.shape[1]
    d_out = w3.shape[1]

    # bf16 operands for the MXU (f32 accumulation inside the kernel).  Biases
    # stay f32 and are added to the f32 accumulators.
    bf16 = jnp.bfloat16
    x = x.astype(bf16)
    w1 = w1.astype(bf16)
    w2 = w2.astype(bf16)
    w3 = w3.astype(bf16)
    b1 = b1.astype(jnp.float32)
    b2 = b2.astype(jnp.float32)
    b3 = b3.astype(jnp.float32)

    # Lane-dense padding of feature / hidden dims.  Zero padding is exact for
    # this MLP (padded hidden units stay 0 through ReLU, padded vocab columns
    # are sliced off at the end).
    d_in_p = _round_up(d_in, 128)
    d_h1_p = _round_up(d_h1, 128)
    d_h2_p = _round_up(d_h2, 128)

    # ---- tile selection -------------------------------------------------
    assert tm % 8 == 0 and tn % 128 == 0
    tn = min(tn, _round_up(d_out, 128))
    tm = min(tm, _round_up(n, 8))
    # Megacore (v7x, 2 TCs): keep >= 2 token tiles on the "parallel" axis when
    # there are enough tokens so both cores get work.
    # TODO(synk): for tiny N (single-token decode) the vocab axis would have
    # to be split across cores instead; not implemented here.
    if n > 8:
        tm = min(tm, max(8, _round_up(-(-n // 2), 8)))

    out_isz = jnp.dtype(out_dtype).itemsize

    def vmem_estimate(tm_, tn_):
        resident = ((d_in_p * d_h1_p + d_h1_p * d_h2_p) * 2   # w1, w2 (bf16)
                    + (d_h1_p + d_h2_p) * 4)                  # b1, b2 (f32)
        streamed = 2 * (tm_ * d_in_p * 2       # x tile (bf16, double-buffered)
                        + d_h2_p * tn_ * 2     # w3 tile (bf16)
                        + tn_ * 4              # b3 tile (f32)
                        + tm_ * tn_ * out_isz)  # out tile
        scratch = tm_ * d_h2_p * 2                                # h2 (bf16)
        temps = tm_ * max(d_h1_p, d_h2_p) * 4 + tm_ * tn_ * 4     # f32 temps
        return resident + streamed + scratch + temps

    budget = _vmem_budget_bytes()
    while vmem_estimate(tm, tn) + (4 << 20) > budget:
        if tn > 512:
            tn = _round_up(tn // 2, 128)
        elif tm > 128:
            tm = _round_up(tm // 2, 8)
        elif tn > 128:
            tn = _round_up(tn // 2, 128)
        elif tm > 8:
            tm = _round_up(tm // 2, 8)
        else:
            break
    vmem_limit = int(min(vmem_estimate(tm, tn) + (4 << 20), budget))

    n_p = _round_up(n, tm)
    v_p = _round_up(d_out, tn)

    x_p = _pad2d(x, n_p, d_in_p)
    w1_p = _pad2d(w1, d_in_p, d_h1_p)
    b1_p = _pad2d(b1, 1, d_h1_p)
    w2_p = _pad2d(w2, d_h1_p, d_h2_p)
    b2_p = _pad2d(b2, 1, d_h2_p)
    w3_p = _pad2d(w3, d_h2_p, v_p)
    b3_p = _pad2d(b3, 1, v_p)

    grid = (n_p // tm, v_p // tn)

    # Small layer-1/2 weights live as a single VMEM-resident copy (no
    # double-buffering) — reclaims VMEM for larger tm/tn.
    vmem_resident = pl.BlockSpec(memory_space=pltpu.MemorySpace.VMEM)

    out_p = pl.pallas_call(
        ffnn_kernel,
        out_shape=jax.ShapeDtypeStruct((n_p, v_p), out_dtype),
        grid_spec=pltpu.PrefetchScalarGridSpec(
            num_scalar_prefetch=0,
            grid=grid,
            in_specs=[
                pl.BlockSpec((tm, d_in_p), lambda i, j: (i, 0)),  # x tile
                vmem_resident,                                    # w1
                vmem_resident,                                    # b1
                vmem_resident,                                    # w2
                vmem_resident,                                    # b2
                pl.BlockSpec((d_h2_p, tn), lambda i, j: (0, j)),  # w3 tile
                pl.BlockSpec((1, tn), lambda i, j: (0, j)),       # b3 tile
            ],
            out_specs=pl.BlockSpec((tm, tn), lambda i, j: (i, j)),
            scratch_shapes=[pltpu.VMEM((tm, d_h2_p), jnp.bfloat16)],  # h2 cache
        ),
        compiler_params=pltpu.CompilerParams(
            dimension_semantics=("parallel", "arbitrary"),
            vmem_limit_bytes=vmem_limit,
        ),
    )(x_p, w1_p, b1_p, w2_p, b2_p, w3_p, b3_p)

    return out_p[:n, :d_out]


def ffnn_reference(x, w1, b1, w2, b2, w3, b3):
    """Pure-JAX reference mimicking the kernel's precision: bf16 operands,
    f32 accumulation, bf16 intermediate activations."""
    bf = jnp.bfloat16
    f32 = jnp.float32
    h1 = jnp.dot(x.astype(bf), w1.astype(bf), preferred_element_type=f32)
    h1 = jnp.maximum(h1 + b1.astype(f32), 0.0).astype(bf)
    h2 = jnp.dot(h1, w2.astype(bf), preferred_element_type=f32)
    h2 = jnp.maximum(h2 + b2.astype(f32), 0.0).astype(bf)
    return jnp.dot(h2, w3.astype(bf), preferred_element_type=f32) + b3.astype(f32)


class CaptionHeadParams:
    """Deterministic synthetic parameters for CaptionBase.ffnn.

    Mirrors FFNN(input_dim=hidden_dim, hidden_dim=[ffnn_hidden],
                 output_dim=vocab_size, num_layers=3):
      Linear(hidden_dim -> ffnn_hidden)
      Linear(ffnn_hidden -> ffnn_hidden)
      Linear(ffnn_hidden -> vocab_size)
    """

    def __init__(self, key, hidden_dim, ffnn_hidden, vocab_size):
        ks = jax.random.split(key, 6)

        # PyTorch nn.Linear stores weight as (out, in); transpose to (in, out)
        # when feeding the kernel so it runs plain `x @ W` MXU matmuls.
        def linear(kw, kb, fan_in, fan_out):
            bound = 1.0 / jnp.sqrt(fan_in)
            w = jax.random.uniform(kw, (fan_out, fan_in), jnp.float32, -bound, bound)
            b = jax.random.uniform(kb, (fan_out,), jnp.float32, -bound, bound)
            return w, b

        self.w1, self.b1 = linear(ks[0], ks[1], hidden_dim, ffnn_hidden)
        self.w2, self.b2 = linear(ks[2], ks[3], ffnn_hidden, ffnn_hidden)
        self.w3, self.b3 = linear(ks[4], ks[5], ffnn_hidden, vocab_size)

    def kernel_args(self):
        return (
            self.w1.T, self.b1[None, :],
            self.w2.T, self.b2[None, :],
            self.w3.T, self.b3[None, :],
        )


def caption_head_forward(decoder_features, params, **kw):
    """decoder_features: (B, S, hidden_dim) -> vocab logits (B, S, vocab)."""
    b, s, d = decoder_features.shape
    x2d = decoder_features.reshape(b * s, d)
    logits2d = ffnn_forward(x2d, *params.kernel_args(), **kw)
    return logits2d.reshape(b, s, -1)


if __name__ == "__main__":
    # Small, module-consistent shapes: decoder hidden states (B, S, hidden_dim).
    B, S = 2, 8
    hidden_dim = 32      # decoder['hidden_dim']
    ffnn_hidden = 64     # ffnn_hidden_dims=[64]
    vocab_size = 384     # decoder['vocab_size'] (3 vocab tiles at tn=128)

    key = jax.random.PRNGKey(0)
    k_x, k_p = jax.random.split(key)

    # TODO(synk): encoder (image CNN) and decoder (transformer) are abstract /
    # config-built in CaptionBase; we synthesize their output features directly.
    decoder_features = jax.random.normal(k_x, (B, S, hidden_dim), jnp.float32)
    params = CaptionHeadParams(k_p, hidden_dim, ffnn_hidden, vocab_size)

    # Demo tiles shrunk so the toy shapes still exercise a multi-tile grid
    # (2 token tiles x 3 vocab tiles), including the h2-reuse carry path.
    # Production defaults are tm=512, tn=1024 with bf16 logits; the demo keeps
    # f32 logits for a tighter correctness check.
    logits = caption_head_forward(decoder_features, params,
                                  tm=8, tn=128, out_dtype=jnp.float32)
    logits = jax.block_until_ready(logits)

    # Correctness check against a pure-JAX reference of the same math /
    # precision (bf16 operands, f32 accumulation).
    ref = ffnn_reference(
        decoder_features.reshape(B * S, hidden_dim), *params.kernel_args()
    ).reshape(B, S, vocab_size)
    assert logits.shape == (B, S, vocab_size)
    assert jnp.allclose(logits, ref, atol=1e-2, rtol=1e-2), (
        float(jnp.max(jnp.abs(logits - ref))))

    print("KERNEL_OK")
</pallas_src>

<mosaic_0001>
module attributes {stable_mosaic.version = 11 : i64} {
  func.func @ffnn_kernel(%arg0: i32, %arg1: i32, %arg2: memref<8x128xbf16, #tpu.memory_space<vmem>>, %arg3: memref<128x128xbf16, #tpu.memory_space<vmem>>, %arg4: memref<1x128xf32, #tpu.memory_space<vmem>>, %arg5: memref<128x128xbf16, #tpu.memory_space<vmem>>, %arg6: memref<1x128xf32, #tpu.memory_space<vmem>>, %arg7: memref<128x128xbf16, #tpu.memory_space<vmem>>, %arg8: memref<1x128xf32, #tpu.memory_space<vmem>>, %arg9: memref<8x128xf32, #tpu.memory_space<vmem>>, %arg10: memref<8x128xbf16, #tpu.memory_space<vmem>>) attributes {dimension_semantics = [#tpu.dimension_semantics<parallel>, #tpu.dimension_semantics<arbitrary>], iteration_bounds = array<i64: 2, 3>, scalar_prefetch = 0 : i64, scratch_operands = 1 : i64, tpu.core_type = #tpu.core_type<tc>, window_params = [{transform_indices = @transform_0, window_bounds = array<i64: 8, 128>}, {pipeline_mode = #tpu.pipeline_mode<synchronous>, transform_indices = @transform_1, window_bounds = array<i64: 128, 128>}, {pipeline_mode = #tpu.pipeline_mode<synchronous>, transform_indices = @transform_2, window_bounds = array<i64: 1, 128>}, {pipeline_mode = #tpu.pipeline_mode<synchronous>, transform_indices = @transform_3, window_bounds = array<i64: 128, 128>}, {pipeline_mode = #tpu.pipeline_mode<synchronous>, transform_indices = @transform_4, window_bounds = array<i64: 1, 128>}, {transform_indices = @transform_5, window_bounds = array<i64: 128, 128>}, {transform_indices = @transform_6, window_bounds = array<i64: 1, 128>}, {transform_indices = @transform_7, window_bounds = array<i64: 8, 128>}]} {
    %c0_i32 = arith.constant 0 : i32
    %0 = arith.cmpi eq, %arg1, %c0_i32 : i32
    %1 = arith.extui %0 : i1 to i32
    %c0_i32_0 = arith.constant 0 : i32
    %2 = arith.cmpi ne, %1, %c0_i32_0 : i32
    scf.if %2 {
      %c0_8 = arith.constant 0 : index
      %c0_9 = arith.constant 0 : index
      %10 = vector.load %arg2[%c0_8, %c0_9] : memref<8x128xbf16, #tpu.memory_space<vmem>>, vector<8x128xbf16>
      %c0_10 = arith.constant 0 : index
      %c0_11 = arith.constant 0 : index
      %11 = vector.load %arg3[%c0_10, %c0_11] : memref<128x128xbf16, #tpu.memory_space<vmem>>, vector<128x128xbf16>
      %cst_12 = arith.constant dense<0.000000e+00> : vector<8x128xf32>
      %12 = tpu.matmul %10, %11, %cst_12 {dimension_numbers = #tpu.dot_dimension_numbers<[1], [0], [0], [1], [0, 0, 1, 1], [], []>} : vector<8x128xbf16>, vector<128x128xbf16>, vector<8x128xf32> -> vector<8x128xf32>
      %c0_13 = arith.constant 0 : index
      %c0_14 = arith.constant 0 : index
      %13 = vector.load %arg4[%c0_13, %c0_14] : memref<1x128xf32, #tpu.memory_space<vmem>>, vector<1x128xf32>
      %14 = vector.broadcast %13 : vector<1x128xf32> to vector<8x128xf32>
      %15 = arith.addf %12, %14 : vector<8x128xf32>
      %cst_15 = arith.constant 0.000000e+00 : f32
      %16 = vector.broadcast %cst_15 : f32 to vector<8x128xf32>
      %17 = arith.maximumf %15, %16 : vector<8x128xf32>
      %18 = arith.truncf %17 : vector<8x128xf32> to vector<8x128xbf16>
      %c0_16 = arith.constant 0 : index
      %c0_17 = arith.constant 0 : index
      %19 = vector.load %arg5[%c0_16, %c0_17] : memref<128x128xbf16, #tpu.memory_space<vmem>>, vector<128x128xbf16>
      %cst_18 = arith.constant dense<0.000000e+00> : vector<8x128xf32>
      %20 = tpu.matmul %18, %19, %cst_18 {dimension_numbers = #tpu.dot_dimension_numbers<[1], [0], [0], [1], [0, 0, 1, 1], [], []>} : vector<8x128xbf16>, vector<128x128xbf16>, vector<8x128xf32> -> vector<8x128xf32>
      %c0_19 = arith.constant 0 : index
      %c0_20 = arith.constant 0 : index
      %21 = vector.load %arg6[%c0_19, %c0_20] : memref<1x128xf32, #tpu.memory_space<vmem>>, vector<1x128xf32>
      %22 = vector.broadcast %21 : vector<1x128xf32> to vector<8x128xf32>
      %23 = arith.addf %20, %22 : vector<8x128xf32>
      %cst_21 = arith.constant 0.000000e+00 : f32
      %24 = vector.broadcast %cst_21 : f32 to vector<8x128xf32>
      %25 = arith.maximumf %23, %24 : vector<8x128xf32>
      %26 = arith.truncf %25 : vector<8x128xf32> to vector<8x128xbf16>
      %c0_22 = arith.constant 0 : index
      %c0_23 = arith.constant 0 : index
      %27 = vector.load %arg10[%c0_22, %c0_23] : memref<8x128xbf16, #tpu.memory_space<vmem>>, vector<8x128xbf16>
      tpu.vector_store %arg10[%c0_22, %c0_23], %26 {strides = array<i32>} : memref<8x128xbf16, #tpu.memory_space<vmem>>, vector<8x128xbf16>,
    } else {
    }
    %c0 = arith.constant 0 : index
    %c0_1 = arith.constant 0 : index
    %3 = vector.load %arg10[%c0, %c0_1] : memref<8x128xbf16, #tpu.memory_space<vmem>>, vector<8x128xbf16>
    %c0_2 = arith.constant 0 : index
    %c0_3 = arith.constant 0 : index
    %4 = vector.load %arg7[%c0_2, %c0_3] : memref<128x128xbf16, #tpu.memory_space<vmem>>, vector<128x128xbf16>
    %cst = arith.constant dense<0.000000e+00> : vector<8x128xf32>
    %5 = tpu.matmul %3, %4, %cst {dimension_numbers = #tpu.dot_dimension_numbers<[1], [0], [0], [1], [0, 0, 1, 1], [], []>} : vector<8x128xbf16>, vector<128x128xbf16>, vector<8x128xf32> -> vector<8x128xf32>
    %c0_4 = arith.constant 0 : index
    %c0_5 = arith.constant 0 : index
    %6 = vector.load %arg8[%c0_4, %c0_5] : memref<1x128xf32, #tpu.memory_space<vmem>>, vector<1x128xf32>
    %7 = vector.broadcast %6 : vector<1x128xf32> to vector<8x128xf32>
    %8 = arith.addf %5, %7 : vector<8x128xf32>
    %c0_6 = arith.constant 0 : index
    %c0_7 = arith.constant 0 : index
    %9 = vector.load %arg9[%c0_6, %c0_7] : memref<8x128xf32, #tpu.memory_space<vmem>>, vector<8x128xf32>
    tpu.vector_store %arg9[%c0_6, %c0_7], %8 {strides = array<i32>} : memref<8x128xf32, #tpu.memory_space<vmem>>, vector<8x128xf32>,
    return
  }
  func.func @transform_0(%arg0: i32, %arg1: i32) -> (i32, i32) {
    %c0_i32 = arith.constant 0 : i32
    %c0_i32_0 = arith.constant 0 : i32
    return %arg0, %c0_i32 : i32, i32
  }
  func.func @transform_1(%arg0: i32, %arg1: i32) -> (i32, i32) {
    %c0_i32 = arith.constant 0 : i32
    %c0_i32_0 = arith.constant 0 : i32
    %c0_i32_1 = arith.constant 0 : i32
    return %c0_i32, %c0_i32_0 : i32, i32
  }
  func.func @transform_2(%arg0: i32, %arg1: i32) -> (i32, i32) {
    %c0_i32 = arith.constant 0 : i32
    %c0_i32_0 = arith.constant 0 : i32
    %c0_i32_1 = arith.constant 0 : i32
    return %c0_i32, %c0_i32_0 : i32, i32
  }
  func.func @transform_3(%arg0: i32, %arg1: i32) -> (i32, i32) {
    %c0_i32 = arith.constant 0 : i32
    %c0_i32_0 = arith.constant 0 : i32
    %c0_i32_1 = arith.constant 0 : i32
    return %c0_i32, %c0_i32_0 : i32, i32
  }
  func.func @transform_4(%arg0: i32, %arg1: i32) -> (i32, i32) {
    %c0_i32 = arith.constant 0 : i32
    %c0_i32_0 = arith.constant 0 : i32
    %c0_i32_1 = arith.constant 0 : i32
    return %c0_i32, %c0_i32_0 : i32, i32
  }
  func.func @transform_5(%arg0: i32, %arg1: i32) -> (i32, i32) {
    %c0_i32 = arith.constant 0 : i32
    %c0_i32_0 = arith.constant 0 : i32
    return %c0_i32, %arg1 : i32, i32
  }
  func.func @transform_6(%arg0: i32, %arg1: i32) -> (i32, i32) {
    %c0_i32 = arith.constant 0 : i32
    %c0_i32_0 = arith.constant 0 : i32
    return %c0_i32, %arg1 : i32, i32
  }
  func.func @transform_7(%arg0: i32, %arg1: i32) -> (i32, i32) {
    %c0_i32 = arith.constant 0 : i32
    return %arg0, %arg1 : i32, i32
  }
}

</mosaic_0001>

<llo_original>
// kernel: tpu_custom_call.1
$region0: #{tpu_custom_call.1}
  #allocation0 [shape = 'u32[]', space=smem, size = 0x4, offset = 0x4, fixed_abs, tag = 'smem constant byte address 0x4 - core index']
  #allocation1 [shape = 'u32[144,128]{1,0:T(1,128)}', space=vmem, size = 0x12000, scoped, tag = 'internal scratch']
  #allocation2 [shape = 'bf16[8,128]{1,0:T(8,128)(2,1)}', space=vmem, size = 0x800, scoped, tag = 'scratch operand']
  %s0 = inlined_call_operand.hbm [shape: bf16[16,128], index: 0, kind: input, shape index: {}]
  %s1 = inlined_call_operand.hbm [shape: bf16[128,128], index: 1, kind: input, shape index: {}]
  %s2 = inlined_call_operand.vmem [shape: f32[1,128], index: 2, kind: input, shape index: {}]
  %s3 = inlined_call_operand.hbm [shape: bf16[128,128], index: 3, kind: input, shape index: {}]
  %s4 = inlined_call_operand.vmem [shape: f32[1,128], index: 4, kind: input, shape index: {}]
  %s5 = inlined_call_operand.hbm [shape: bf16[128,384], index: 5, kind: input, shape index: {}]
  %s6 = inlined_call_operand.vmem [shape: f32[1,384], index: 6, kind: input, shape index: {}]
  %s7 = inlined_call_operand.hbm [shape: f32[16,384], index: 7, kind: output, shape index: {}]
  %s8 = sld [smem:[#allocation0]]
  $region81: #{tpu_custom_call.1} parent=0
    _
  %s10 = ssub.s32 1, %s8
  %s11 = scalar_select 0, %s10, %s8
  $region1: #{tpu_custom_call.1} parent=0
    #allocation3 [shape = 'u8[4096]{0}', space=vmem, size = 0x1000, scoped, tag = 'input window, operand 0']
    #allocation4 [shape = 's32[2]{0}', space=sflag, size = 0x8, scoped, tag = 'scoped memory for tpu_custom_call.1']
    #allocation5 [shape = 's32[2]{0}', space=sflag, size = 0x8, scoped, tag = 'scoped memory for tpu_custom_call.1']
    #allocation6 [shape = 'u8[32768]{0}', space=vmem, size = 0x8000, scoped, tag = 'input window, operand 1, single buffered']
    #allocation7 [shape = 's32[1]{0}', space=sflag, size = 0x4, scoped, tag = 'scoped memory for tpu_custom_call.1']
    #allocation8 [shape = 'u8[32768]{0}', space=vmem, size = 0x8000, scoped, tag = 'input window, operand 3, single buffered']
    #allocation9 [shape = 'u8[65536]{0}', space=vmem, size = 0x10000, scoped, tag = 'input window, operand 5']
    #allocation10 [shape = 's32[2]{0}', space=sflag, size = 0x8, scoped, tag = 'scoped memory for tpu_custom_call.1']
    #allocation11 [shape = 'u8[8192]{0}', space=vmem, size = 0x2000, scoped, tag = 'output window, operand 0']
    %12 = vsyncpa [#allocation4], 0
    %s13 = scalar_lea.sflag [#allocation4], 1
    %14 = vsyncpa %s13, 0
    %15 = vsyncpa [#allocation7], 0
    %16 = vsyncpa [#allocation10], 0
    %s17 = scalar_lea.sflag [#allocation10], 1
    %18 = vsyncpa %s17, 0
    %19 = vsyncpa [#allocation5], 0
    %s20 = scalar_lea.sflag [#allocation5], 1
    %21 = vsyncpa %s20, 0
    loop: start=0, step=1, limit=8
    $region2: #{tpu_custom_call.1} parent=1 // loop_pre_header
      _
    $region3: #{tpu_custom_call.1} parent=1 // loop_header
      %s23 = sphi 0, %s27
      %p24 = scmp.ge.s32.totalorder %s23, 8
      %s30 = sphi 0, %s42
      %s31 = sphi 0, %s38
      %s32 = sphi 0, %s30
      %s33 = sphi 0, %s31
      %s34 = sphi 0, %s32
      %s35 = sphi 0, %s33
      %s45 = sphi 0, %s47
      %s48 = sphi 0, %s45
      %s49 = sphi 0, %s48
      %s65 = sphi 0, %s49
      %s69 = sphi 0, %s69
      %s71 = sphi 0, %s69
      %s72 = sphi 0, %s71
      %s86 = sphi 0, %s72
      %s90 = sphi 0, %s90
      %s92 = sphi 0, %s90
      %s93 = sphi 0, %s92
      %s107 = sphi 0, %s93
      %s111 = sphi 0, %s111
      %s113 = sphi 0, %s111
      %s114 = sphi 0, %s113
      %s128 = sphi 0, %s114
      %s132 = sphi 0, %s132
      %s134 = sphi 0, %s132
      %s135 = sphi 0, %s134
      %s149 = sphi 0, %s135
      %s155 = sphi 0, %s157
      %s158 = sphi 0, %s155
      %s159 = sphi 0, %s158
      %s175 = sphi 0, %s159
      %s181 = sphi 0, %s183
      %s184 = sphi 0, %s181
      %s185 = sphi 0, %s184
      %s201 = sphi 0, %s185
      %s209 = sphi 0, %s211
      %s212 = sphi 0, %s209
      %s213 = sphi 0, %s212
      %s229 = sphi 0, %s213
    $region4: #{tpu_custom_call.1} parent=1 // loop_header_branch
      %26 = sbr.rel (%p24) target = $region8
    $region5: #{tpu_custom_call.1} parent=1 // loop_body
      %s28 = ssub.s32 %s23, 1
      %s29 = ssub.s32 %s23, 2
      %s36 = sadd.s32 1, %s31
      %p37 = scmp.ge.s32.totalorder %s36, 3
      %s38 = scalar_select %p37, 0, %s36
      %s39 = sadd.s32 1, %s30
      %s40 = scalar_select %p37, %s39, %s30
      %p41 = scmp.ge.s32.totalorder %s40, 2
      %s42 = scalar_select %p41, 0, %s40
      %s43 = ssub.s32 %s30, %s42
      %p44 = scmp.eq.s32.totalorder %s43, 0
      %s46 = sadd.s32 %s45, 1
      %s47 = scalar_select %p44, %s45, %s46
      %p50 = pneg %p44
      %p51 = scmp.eq.s32.totalorder %s23, 5
      %p52 = por %p50, %p51
      %p53 = scmp.ne.s32.totalorder %s45, %s48
      %p54 = scmp.eq.s32.totalorder %s23, 0
      %p55 = por %p53, %p54
      %p56 = scmp.ne.s32.totalorder %s45, %s48
      %p57 = scmp.eq.s32.totalorder %s28, 5
      %p58 = por %p56, %p57
      %p59 = scmp.ne.s32.totalorder %s48, %s49
      %p60 = scmp.eq.s32.totalorder %s28, 0
      %p61 = por %p59, %p60
      %p62 = scmp.ne.s32.totalorder %s48, %s49
      %p63 = scmp.eq.s32.totalorder %s29, 5
      %p64 = por %p62, %p63
      %p66 = scmp.ne.s32.totalorder %s49, %s65
      %p67 = scmp.eq.s32.totalorder %s29, 0
      %p68 = por %p66, %p67
      %s70 = sadd.s32 %s69, 1
      %p73 = scmp.eq.s32.totalorder %s23, 5
      %p74 = scmp.ne.s32.totalorder %s69, %s71
      %p75 = scmp.eq.s32.totalorder %s23, 0
      %p76 = por %p74, %p75
      %p77 = scmp.ne.s32.totalorder %s69, %s71
      %p78 = scmp.eq.s32.totalorder %s28, 5
      %p79 = por %p77, %p78
      %p80 = scmp.ne.s32.totalorder %s71, %s72
      %p81 = scmp.eq.s32.totalorder %s28, 0
      %p82 = por %p80, %p81
      %p83 = scmp.ne.s32.totalorder %s71, %s72
      %p84 = scmp.eq.s32.totalorder %s29, 5
      %p85 = por %p83, %p84
      %p87 = scmp.ne.s32.totalorder %s72, %s86
      %p88 = scmp.eq.s32.totalorder %s29, 0
      %p89 = por %p87, %p88
      %s91 = sadd.s32 %s90, 1
      %p94 = scmp.eq.s32.totalorder %s23, 5
      %p95 = scmp.ne.s32.totalorder %s90, %s92
      %p96 = scmp.eq.s32.totalorder %s23, 0
      %p97 = por %p95, %p96
      %p98 = scmp.ne.s32.totalorder %s90, %s92
      %p99 = scmp.eq.s32.totalorder %s28, 5
      %p100 = por %p98, %p99
      %p101 = scmp.ne.s32.totalorder %s92, %s93
      %p102 = scmp.eq.s32.totalorder %s28, 0
      %p103 = por %p101, %p102
      %p104 = scmp.ne.s32.totalorder %s92, %s93
      %p105 = scmp.eq.s32.totalorder %s29, 5
      %p106 = por %p104, %p105
      %p108 = scmp.ne.s32.totalorder %s93, %s107
      %p109 = scmp.eq.s32.totalorder %s29, 0
      %p110 = por %p108, %p109
      %s112 = sadd.s32 %s111, 1
      %p115 = scmp.eq.s32.totalorder %s23, 5
      %p116 = scmp.ne.s32.totalorder %s111, %s113
      %p117 = scmp.eq.s32.totalorder %s23, 0
      %p118 = por %p116, %p117
      %p119 = scmp.ne.s32.totalorder %s111, %s113
      %p120 = scmp.eq.s32.totalorder %s28, 5
      %p121 = por %p119, %p120
      %p122 = scmp.ne.s32.totalorder %s113, %s114
      %p123 = scmp.eq.s32.totalorder %s28, 0
      %p124 = por %p122, %p123
      %p125 = scmp.ne.s32.totalorder %s113, %s114
      %p126 = scmp.eq.s32.totalorder %s29, 5
      %p127 = por %p125, %p126
      %p129 = scmp.ne.s32.totalorder %s114, %s128
      %p130 = scmp.eq.s32.totalorder %s29, 0
      %p131 = por %p129, %p130
      %s133 = sadd.s32 %s132, 1
      %p136 = scmp.eq.s32.totalorder %s23, 5
      %p137 = scmp.ne.s32.totalorder %s132, %s134
      %p138 = scmp.eq.s32.totalorder %s23, 0
      %p139 = por %p137, %p138
      %p140 = scmp.ne.s32.totalorder %s132, %s134
      %p141 = scmp.eq.s32.totalorder %s28, 5
      %p142 = por %p140, %p141
      %p143 = scmp.ne.s32.totalorder %s134, %s135
      %p144 = scmp.eq.s32.totalorder %s28, 0
      %p145 = por %p143, %p144
      %p146 = scmp.ne.s32.totalorder %s134, %s135
      %p147 = scmp.eq.s32.totalorder %s29, 5
      %p148 = por %p146, %p147
      %p150 = scmp.ne.s32.totalorder %s135, %s149
      %p151 = scmp.eq.s32.totalorder %s29, 0
      %p152 = por %p150, %p151
      %s153 = ssub.s32 %s31, %s38
      %p154 = scmp.eq.s32.totalorder %s153, 0
      %s156 = sadd.s32 %s155, 1
      %s157 = scalar_select %p154, %s155, %s156
      %p160 = pneg %p154
      %p161 = scmp.eq.s32.totalorder %s23, 5
      %p162 = por %p160, %p161
      %p163 = scmp.ne.s32.totalorder %s155, %s158
      %p164 = scmp.eq.s32.totalorder %s23, 0
      %p165 = por %p163, %p164
      %p166 = scmp.ne.s32.totalorder %s155, %s158
      %p167 = scmp.eq.s32.totalorder %s28, 5
      %p168 = por %p166, %p167
      %p169 = scmp.ne.s32.totalorder %s158, %s159
      %p170 = scmp.eq.s32.totalorder %s28, 0
      %p171 = por %p169, %p170
      %p172 = scmp.ne.s32.totalorder %s158, %s159
      %p173 = scmp.eq.s32.totalorder %s29, 5
      %p174 = por %p172, %p173
      %p176 = scmp.ne.s32.totalorder %s159, %s175
      %p177 = scmp.eq.s32.totalorder %s29, 0
      %p178 = por %p176, %p177
      %s179 = ssub.s32 %s31, %s38
      %p180 = scmp.eq.s32.totalorder %s179, 0
      %s182 = sadd.s32 %s181, 1
      %s183 = scalar_select %p180, %s181, %s182
      %p186 = pneg %p180
      %p187 = scmp.eq.s32.totalorder %s23, 5
      %p188 = por %p186, %p187
      %p189 = scmp.ne.s32.totalorder %s181, %s184
      %p190 = scmp.eq.s32.totalorder %s23, 0
      %p191 = por %p189, %p190
      %p192 = scmp.ne.s32.totalorder %s181, %s184
      %p193 = scmp.eq.s32.totalorder %s28, 5
      %p194 = por %p192, %p193
      %p195 = scmp.ne.s32.totalorder %s184, %s185
      %p196 = scmp.eq.s32.totalorder %s28, 0
      %p197 = por %p195, %p196
      %p198 = scmp.ne.s32.totalorder %s184, %s185
      %p199 = scmp.eq.s32.totalorder %s29, 5
      %p200 = por %p198, %p199
      %p202 = scmp.ne.s32.totalorder %s185, %s201
      %p203 = scmp.eq.s32.totalorder %s29, 0
      %p204 = por %p202, %p203
      %s205 = ssub.s32 %s30, %s42
      %s206 = ssub.s32 %s31, %s38
      %s207 = sor.u32 %s205, %s206
      %p208 = scmp.eq.s32.totalorder %s207, 0
      %s210 = sadd.s32 %s209, 1
      %s211 = scalar_select %p208, %s209, %s210
      %p214 = pneg %p208
      %p215 = scmp.eq.s32.totalorder %s23, 5
      %p216 = por %p214, %p215
      %p217 = scmp.ne.s32.totalorder %s209, %s212
      %p218 = scmp.eq.s32.totalorder %s23, 0
      %p219 = por %p217, %p218
      %p220 = scmp.ne.s32.totalorder %s209, %s212
      %p221 = scmp.eq.s32.totalorder %s28, 5
      %p222 = por %p220, %p221
      %p223 = scmp.ne.s32.totalorder %s212, %s213
      %p224 = scmp.eq.s32.totalorder %s28, 0
      %p225 = por %p223, %p224
      %p226 = scmp.ne.s32.totalorder %s212, %s213
      %p227 = scmp.eq.s32.totalorder %s29, 5
      %p228 = por %p226, %p227
      %p230 = scmp.ne.s32.totalorder %s213, %s229
      %p231 = scmp.eq.s32.totalorder %s29, 0
      %p232 = por %p230, %p231
      %p233 = scmp.le.s32.totalorder 1, %s23
      %p234 = scmp.lt.s32.totalorder %s23, 7
      %p235 = pnand %p233, %p234
      %p236 = pneg %p235
      // Predicated region
      $region9: #{tpu_custom_call.1} parent=5 // pred_check
        _
      $region10: #{tpu_custom_call.1} parent=5 // pred_check_branch
        %238 = sbr.rel (%p235) target = $region12
      $region11: #{tpu_custom_call.1} parent=5 // pred_region
        %s239 = ssub.s32 %s23, 1
        // Predicated region
        $region13: #{tpu_custom_call.1} parent=11 // pred_check
          %p240 = pneg %p82
        $region14: #{tpu_custom_call.1} parent=11 // pred_check_branch
          %242 = sbr.rel (%p240) target = $region16
        $region15: #{tpu_custom_call.1} parent=11 // pred_region
          %s244 = ssub.s32 1024, 1024
          %245 = vsyncadd [#allocation7], %s244
          %s246 = sshll.u32 [#allocation6], 4
          %s247 = int_to_ptr.vmem [resolvable:$true] %s246
          %252 = dma.hbm_to_vmem [thread:$0]  %s1, 1024, %s247, [#allocation7], 64, 64, 4
        $region16: #{tpu_custom_call.1} parent=11 // pred_fallthru
          _
        // Predicated region
        $region17: #{tpu_custom_call.1} parent=11 // pred_check
          %p253 = pneg %p103
        $region18: #{tpu_custom_call.1} parent=11 // pred_check_branch
          %255 = sbr.rel (%p253) target = $region20
        $region19: #{tpu_custom_call.1} parent=11 // pred_region
          _
        $region20: #{tpu_custom_call.1} parent=11 // pred_fallthru
          _
        // Predicated region
        $region21: #{tpu_custom_call.1} parent=11 // pred_check
          %p256 = pneg %p124
        $region22: #{tpu_custom_call.1} parent=11 // pred_check_branch
          %258 = sbr.rel (%p256) target = $region24
        $region23: #{tpu_custom_call.1} parent=11 // pred_region
          %s260 = ssub.s32 1024, 1024
          %261 = vsyncadd [#allocation7], %s260
          %s262 = sshll.u32 [#allocation8], 4
          %s263 = int_to_ptr.vmem [resolvable:$true] %s262
          %268 = dma.hbm_to_vmem [thread:$0]  %s3, 1024, %s263, [#allocation7], 64, 64, 4
        $region24: #{tpu_custom_call.1} parent=11 // pred_fallthru
          _
        // Predicated region
        $region25: #{tpu_custom_call.1} parent=11 // pred_check
          %p269 = pneg %p145
        $region26: #{tpu_custom_call.1} parent=11 // pred_check_branch
          %271 = sbr.rel (%p269) target = $region28
        $region27: #{tpu_custom_call.1} parent=11 // pred_region
          _
        $region28: #{tpu_custom_call.1} parent=11 // pred_fallthru
          _
      $region12: #{tpu_custom_call.1} parent=5 // pred_fallthru
        _
      %p272 = scmp.lt.s32.totalorder %s23, 6
      // Predicated region
      $region29: #{tpu_custom_call.1} parent=5 // pred_check
        %p273 = pneg %p272
      $region30: #{tpu_custom_call.1} parent=5 // pred_check_branch
        %275 = sbr.rel (%p273) target = $region32
      $region31: #{tpu_custom_call.1} parent=5 // pred_region
        // Predicated region
        $region33: #{tpu_custom_call.1} parent=31 // pred_check
          %p276 = pneg %p55
        $region34: #{tpu_custom_call.1} parent=31 // pred_check_branch
          %278 = sbr.rel (%p276) target = $region36
        $region35: #{tpu_custom_call.1} parent=31 // pred_region
          %s279 = sand.u32 %s45, 1
          %s280 = scalar_lea.sflag [#allocation4], %s279
          %s281 = sand.u32 %s45, 1
          %s282 = smul.addr %s281, 4
          %s283 = scalar_lea.vmem [#allocation3], %s282
          %s285 = ssub.s32 64, 64
          %286 = vsyncadd %s280, %s285
          %s287 = smul.addr %s30, 64
          %s288 = scalar_lea.hbm %s0, %s287
          %s290 = sshll.u32 %s283, 4
          %s291 = int_to_ptr.vmem [resolvable:$true] %s290
          %293 = dma.hbm_to_vmem [thread:$0]  %s288, 64, %s291, %s280
        $region36: #{tpu_custom_call.1} parent=31 // pred_fallthru
          _
        // Predicated region
        $region37: #{tpu_custom_call.1} parent=31 // pred_check
          %p294 = pneg %p165
        $region38: #{tpu_custom_call.1} parent=31 // pred_check_branch
          %296 = sbr.rel (%p294) target = $region40
        $region39: #{tpu_custom_call.1} parent=31 // pred_region
          %s297 = sand.u32 %s155, 1
          %s298 = scalar_lea.sflag [#allocation10], %s297
          %s299 = sand.u32 %s155, 1
          %s300 = smul.addr %s299, 64
          %s301 = scalar_lea.vmem [#allocation9], %s300
          %s303 = ssub.s32 1024, 1024
          %304 = vsyncadd %s298, %s303
          %s305 = smul.addr %s31, 64
          %s306 = scalar_lea.hbm %s5, %s305
          %s307 = sshll.u32 %s301, 4
          %s308 = int_to_ptr.vmem [resolvable:$true] %s307
          %313 = dma.hbm_to_vmem [thread:$0]  %s306, 1024, %s308, %s298, 192, 64, 4
        $region40: #{tpu_custom_call.1} parent=31 // pred_fallthru
          _
        // Predicated region
        $region41: #{tpu_custom_call.1} parent=31 // pred_check
          %p314 = pneg %p191
        $region42: #{tpu_custom_call.1} parent=31 // pred_check_branch
          %316 = sbr.rel (%p314) target = $region44
        $region43: #{tpu_custom_call.1} parent=31 // pred_region
          %p317 = scmp.lt.s32.totalorder %s31, 2
          %s318 = scalar_select %p317, %s31, 2
          %s319 = scalar_lea.vmem %s6, %s318
        $region44: #{tpu_custom_call.1} parent=31 // pred_fallthru
          _
      $region32: #{tpu_custom_call.1} parent=5 // pred_fallthru
        _
      %p320 = scmp.le.s32.totalorder 1, %s23
      %p321 = scmp.lt.s32.totalorder %s23, 7
      %p322 = pnand %p320, %p321
      %p323 = pneg %p322
      // Predicated region
      $region45: #{tpu_custom_call.1} parent=5 // pred_check
        _
      $region46: #{tpu_custom_call.1} parent=5 // pred_check_branch
        %325 = sbr.rel (%p322) target = $region48
      $region47: #{tpu_custom_call.1} parent=5 // pred_region
        %s326 = ssub.s32 %s23, 1
        %s327 = sand.u32 %s48, 1
        %s328 = scalar_lea.sflag [#allocation4], %s327
        %s329 = sand.u32 %s48, 1
        %s330 = smul.addr %s329, 4
        %s331 = scalar_lea.vmem [#allocation3], %s330
        // Predicated region
        $region49: #{tpu_custom_call.1} parent=47 // pred_check
          %p332 = pneg %p61
        $region50: #{tpu_custom_call.1} parent=47 // pred_check_branch
          %334 = sbr.rel (%p332) target = $region52
        $region51: #{tpu_custom_call.1} parent=47 // pred_region
          %335 = dma.done %s328, 64
        $region52: #{tpu_custom_call.1} parent=47 // pred_fallthru
          _
        // Predicated region
        $region53: #{tpu_custom_call.1} parent=47 // pred_check
          %p336 = pneg %p82
        $region54: #{tpu_custom_call.1} parent=47 // pred_check_branch
          %338 = sbr.rel (%p336) target = $region56
        $region55: #{tpu_custom_call.1} parent=47 // pred_region
          %339 = dma.done [#allocation7], 1024
        $region56: #{tpu_custom_call.1} parent=47 // pred_fallthru
          _
        // Predicated region
        $region57: #{tpu_custom_call.1} parent=47 // pred_check
          %p340 = pneg %p124
        $region58: #{tpu_custom_call.1} parent=47 // pred_check_branch
          %342 = sbr.rel (%p340) target = $region60
        $region59: #{tpu_custom_call.1} parent=47 // pred_region
          %343 = dma.done [#allocation7], 1024
        $region60: #{tpu_custom_call.1} parent=47 // pred_fallthru
          _
        %s344 = sand.u32 %s158, 1
        %s345 = scalar_lea.sflag [#allocation10], %s344
        %s346 = sand.u32 %s158, 1
        %s347 = smul.addr %s346, 64
        %s348 = scalar_lea.vmem [#allocation9], %s347
        // Predicated region
        $region61: #{tpu_custom_call.1} parent=47 // pred_check
          %p349 = pneg %p171
        $region62: #{tpu_custom_call.1} parent=47 // pred_check_branch
          %351 = sbr.rel (%p349) target = $region64
        $region63: #{tpu_custom_call.1} parent=47 // pred_region
          %352 = dma.done %s345, 1024
        $region64: #{tpu_custom_call.1} parent=47 // pred_fallthru
          _
        %s353 = sand.u32 %s48, 1
        %s354 = scalar_lea.sflag [#allocation4], %s353
        %s355 = sand.u32 %s48, 1
        %s356 = smul.addr %s355, 4
        %s357 = scalar_lea.vmem [#allocation3], %s356
        %p358 = pneg %p61
        %p359 = pneg %p58
        %p360 = pneg %p82
        %p361 = pneg %p79
        %p362 = pneg %p103
        %p363 = pneg %p100
        %p364 = pneg %p124
        %p365 = pneg %p121
        %p366 = pneg %p145
        %p367 = pneg %p142
        %s368 = sand.u32 %s158, 1
        %s369 = scalar_lea.sflag [#allocation10], %s368
        %s370 = sand.u32 %s158, 1
        %s371 = smul.addr %s370, 64
        %s372 = scalar_lea.vmem [#allocation9], %s371
        %p373 = pneg %p171
        %p374 = pneg %p168
        %p375 = scmp.lt.s32.totalorder %s33, 2
        %s376 = scalar_select %p375, %s33, 2
        %s377 = scalar_lea.vmem %s6, %s376
        %p378 = pneg %p197
        %p379 = pneg %p194
        %p380 = pneg %p225
        %p381 = pneg %p222
        %s382 = sand.u32 %s212, 1
        %s383 = scalar_lea.sflag [#allocation5], %s382
        %s384 = sand.u32 %s212, 1
        %s385 = smul.addr %s384, 8
        %s386 = scalar_lea.vmem [#allocation11], %s385
        %p387 = scmp.lt.s32.totalorder %s33, 2
        %s388 = scalar_select %p387, %s33, 2
        %s389 = scalar_lea.vmem %s6, %s388
        %p391 = scmp.eq.s32.totalorder %s33, 0
        // Predicated region
        $region65: #{tpu_custom_call.1} parent=47 // pred_check
          %p392 = pneg %p391
        $region66: #{tpu_custom_call.1} parent=47 // pred_check_branch
          %394 = sbr.rel (%p392) target = $region68
        $region67: #{tpu_custom_call.1} parent=47 // pred_region
          %v395 = vld [vmem:[%s331] sm:$0xf]
          %v396 = vld [vmem:[#allocation6] sm:$0xf]
          %v397 = vld [vmem:[#allocation6 + $0x4] sm:$0xf]
          %v398 = vld [vmem:[#allocation6 + $0x8] sm:$0xf]
          %v399 = vld [vmem:[#allocation6 + $0xc] sm:$0xf]
          %v400 = vld [vmem:[#allocation6 + $0x10] sm:$0xf]
          %v401 = vld [vmem:[#allocation6 + $0x14] sm:$0xf]
          %v402 = vld [vmem:[#allocation6 + $0x18] sm:$0xf]
          %v403 = vld [vmem:[#allocation6 + $0x1c] sm:$0xf]
          %v404 = vld [vmem:[#allocation6 + $0x20] sm:$0xf]
          %v405 = vld [vmem:[#allocation6 + $0x24] sm:$0xf]
          %v406 = vld [vmem:[#allocation6 + $0x28] sm:$0xf]
          %v407 = vld [vmem:[#allocation6 + $0x2c] sm:$0xf]
          %v408 = vld [vmem:[#allocation6 + $0x30] sm:$0xf]
          %v409 = vld [vmem:[#allocation6 + $0x34] sm:$0xf]
          %v410 = vld [vmem:[#allocation6 + $0x38] sm:$0xf]
          %v411 = vld [vmem:[#allocation6 + $0x3c] sm:$0xf]
          %v412 = vld [vmem:[%s2] sm:$0x1]
          %v414 = vlaneseq
          %v415 = vshrl.u32 %v414, 7
          %v416 = vsub.s32 0, %v415
          %v417 = vrot.slane %v412, %v416
          %v435 = vunpack.c.l.b16 %v396
          %v436 = vunpack.c.l.b16 %v397
          %v437 = vunpack.c.l.b16 %v398
          %v438 = vunpack.c.l.b16 %v399
          %v439 = vunpack.c.l.b16 %v400
          %v440 = vunpack.c.l.b16 %v401
          %v441 = vunpack.c.l.b16 %v402
          %v442 = vunpack.c.l.b16 %v403
          %v443 = vunpack.c.l.b16 %v404
          %v444 = vunpack.c.l.b16 %v405
          %v445 = vunpack.c.l.b16 %v406
          %v446 = vunpack.c.l.b16 %v407
          %v447 = vunpack.c.l.b16 %v408
          %v448 = vunpack.c.l.b16 %v409
          %v449 = vunpack.c.l.b16 %v410
          %v450 = vunpack.c.l.b16 %v411
          %v451 = vpack.c.b16 %v436, %v435
          %v452 = vpack.c.b16 %v438, %v437
          %v453 = vpack.c.b16 %v440, %v439
          %v454 = vpack.c.b16 %v442, %v441
          %v455 = vpack.c.b16 %v444, %v443
          %v456 = vpack.c.b16 %v446, %v445
          %v457 = vpack.c.b16 %v448, %v447
          %v458 = vpack.c.b16 %v450, %v449
          %467 = vmatprep.subr.bf16.mxu0 0
          %468 = vmatpush1.bf16.msra.mxu0 %v451
          %469 = vmatprep.subr.bf16.mxu0 0
          %470 = vmatpush1.bf16.msra.mxu0 %v452
          %471 = vmatprep.subr.bf16.mxu0 0
          %472 = vmatpush1.bf16.msra.mxu0 %v453
          %473 = vmatprep.subr.bf16.mxu0 0
          %474 = vmatpush1.bf16.msra.mxu0 %v454
          %475 = vmatprep.subr.bf16.mxu0 0
          %476 = vmatpush1.bf16.msra.mxu0 %v455
          %477 = vmatprep.subr.bf16.mxu0 0
          %478 = vmatpush1.bf16.msra.mxu0 %v456
          %479 = vmatprep.subr.bf16.mxu0 0
          %480 = vmatpush1.bf16.msra.mxu0 %v457
          %481 = vmatprep.subr.bf16.mxu0 0
          %482 = vmatpush1.bf16.msra.mxu0 %v458
          %483 = vmatprep.subr.bf16.mxu0 0
          %484 = vmatpush1.bf16.msra.mxu0 0
          %485 = vmatprep.subr.bf16.mxu0 0
          %486 = vmatpush1.bf16.msra.mxu0 0
          %487 = vmatprep.subr.bf16.mxu0 0
          %488 = vmatpush1.bf16.msra.mxu0 0
          %489 = vmatprep.subr.bf16.mxu0 0
          %490 = vmatpush1.bf16.msra.mxu0 0
          %491 = vmatprep.subr.bf16.mxu0 0
          %492 = vmatpush1.bf16.msra.mxu0 0
          %493 = vmatprep.subr.bf16.mxu0 0
          %494 = vmatpush1.bf16.msra.mxu0 0
          %495 = vmatprep.subr.bf16.mxu0 0
          %496 = vmatpush1.bf16.msra.mxu0 0
          %497 = vmatprep.subr.bf16.mxu0 0
          %498 = vmatpush1.bf16.msra.mxu0 0
          %499 = vmatprep.mubr.bf16.mxu0 0
          %500 = vmatmul.mubr.bf16.gmra.mrb[0].mxu0 %v395
          %v501 = vpop.f32.mrb[0].mxu0
          %v502 = vadd.f32 %v417, %v501
          %v503 = vpop.f32.mrb[0].mxu0
          %v504 = vpop.f32.mrb[0].mxu0
          %v505 = vpop.f32.mrb[0].mxu0
          %506 = vdwg.mxu0
          %v507 = vmax.f32 %v502, 0.0
          %v508 = vpack.c.bf16 %v507, %v507
          %v509 = vld [vmem:[#allocation8] sm:$0xf]
          %v510 = vld [vmem:[#allocation8 + $0x4] sm:$0xf]
          %v511 = vld [vmem:[#allocation8 + $0x8] sm:$0xf]
          %v512 = vld [vmem:[#allocation8 + $0xc] sm:$0xf]
          %v513 = vld [vmem:[#allocation8 + $0x10] sm:$0xf]
          %v514 = vld [vmem:[#allocation8 + $0x14] sm:$0xf]
          %v515 = vld [vmem:[#allocation8 + $0x18] sm:$0xf]
          %v516 = vld [vmem:[#allocation8 + $0x1c] sm:$0xf]
          %v517 = vld [vmem:[#allocation8 + $0x20] sm:$0xf]
          %v518 = vld [vmem:[#allocation8 + $0x24] sm:$0xf]
          %v519 = vld [vmem:[#allocation8 + $0x28] sm:$0xf]
          %v520 = vld [vmem:[#allocation8 + $0x2c] sm:$0xf]
          %v521 = vld [vmem:[#allocation8 + $0x30] sm:$0xf]
          %v522 = vld [vmem:[#allocation8 + $0x34] sm:$0xf]
          %v523 = vld [vmem:[#allocation8 + $0x38] sm:$0xf]
          %v524 = vld [vmem:[#allocation8 + $0x3c] sm:$0xf]
          %v525 = vld [vmem:[%s4] sm:$0x1]
          %v527 = vlaneseq
          %v528 = vshrl.u32 %v527, 7
          %v529 = vsub.s32 0, %v528
          %v530 = vrot.slane %v525, %v529
          %v548 = vunpack.c.l.b16 %v509
          %v549 = vunpack.c.l.b16 %v510
          %v550 = vunpack.c.l.b16 %v511
          %v551 = vunpack.c.l.b16 %v512
          %v552 = vunpack.c.l.b16 %v513
          %v553 = vunpack.c.l.b16 %v514
          %v554 = vunpack.c.l.b16 %v515
          %v555 = vunpack.c.l.b16 %v516
          %v556 = vunpack.c.l.b16 %v517
          %v557 = vunpack.c.l.b16 %v518
          %v558 = vunpack.c.l.b16 %v519
          %v559 = vunpack.c.l.b16 %v520
          %v560 = vunpack.c.l.b16 %v521
          %v561 = vunpack.c.l.b16 %v522
          %v562 = vunpack.c.l.b16 %v523
          %v563 = vunpack.c.l.b16 %v524
          %v564 = vpack.c.b16 %v549, %v548
          %v565 = vpack.c.b16 %v551, %v550
          %v566 = vpack.c.b16 %v553, %v552
          %v567 = vpack.c.b16 %v555, %v554
          %v568 = vpack.c.b16 %v557, %v556
          %v569 = vpack.c.b16 %v559, %v558
          %v570 = vpack.c.b16 %v561, %v560
          %v571 = vpack.c.b16 %v563, %v562
          %580 = vmatprep.subr.bf16.mxu0 0
          %581 = vmatpush1.bf16.msra.mxu0 %v564
          %582 = vmatprep.subr.bf16.mxu0 0
          %583 = vmatpush1.bf16.msra.mxu0 %v565
          %584 = vmatprep.subr.bf16.mxu0 0
          %585 = vmatpush1.bf16.msra.mxu0 %v566
          %586 = vmatprep.subr.bf16.mxu0 0
          %587 = vmatpush1.bf16.msra.mxu0 %v567
          %588 = vmatprep.subr.bf16.mxu0 0
          %589 = vmatpush1.bf16.msra.mxu0 %v568
          %590 = vmatprep.subr.bf16.mxu0 0
          %591 = vmatpush1.bf16.msra.mxu0 %v569
          %592 = vmatprep.subr.bf16.mxu0 0
          %593 = vmatpush1.bf16.msra.mxu0 %v570
          %594 = vmatprep.subr.bf16.mxu0 0
          %595 = vmatpush1.bf16.msra.mxu0 %v571
          %596 = vmatprep.subr.bf16.mxu0 0
          %597 = vmatpush1.bf16.msra.mxu0 0
          %598 = vmatprep.subr.bf16.mxu0 0
          %599 = vmatpush1.bf16.msra.mxu0 0
          %600 = vmatprep.subr.bf16.mxu0 0
          %601 = vmatpush1.bf16.msra.mxu0 0
          %602 = vmatprep.subr.bf16.mxu0 0
          %603 = vmatpush1.bf16.msra.mxu0 0
          %604 = vmatprep.subr.bf16.mxu0 0
          %605 = vmatpush1.bf16.msra.mxu0 0
          %606 = vmatprep.subr.bf16.mxu0 0
          %607 = vmatpush1.bf16.msra.mxu0 0
          %608 = vmatprep.subr.bf16.mxu0 0
          %609 = vmatpush1.bf16.msra.mxu0 0
          %610 = vmatprep.subr.bf16.mxu0 0
          %611 = vmatpush1.bf16.msra.mxu0 0
          %612 = vmatprep.mubr.bf16.mxu0 0
          %613 = vmatmul.mubr.bf16.gmra.mrb[0].mxu0 %v508
          %v614 = vpop.f32.mrb[0].mxu0
          %v615 = vadd.f32 %v530, %v614
          %v616 = vpop.f32.mrb[0].mxu0
          %v617 = vpop.f32.mrb[0].mxu0
          %v618 = vpop.f32.mrb[0].mxu0
          %619 = vdwg.mxu0
          %v620 = vmax.f32 %v615, 0.0
          %v621 = vpack.c.bf16 %v620, %v620
          %622 = vst [vmem:[#allocation2] sm:$0xf] %v621
        $region68: #{tpu_custom_call.1} parent=47 // pred_fallthru
          _
        %v623 = vld [vmem:[#allocation2] sm:$0xf]
        %v624 = vld [vmem:[%s348] sm:$0xf]
        %v625 = vld [vmem:[%s348 + $0x4] sm:$0xf]
        %v626 = vld [vmem:[%s348 + $0x8] sm:$0xf]
        %v627 = vld [vmem:[%s348 + $0xc] sm:$0xf]
        %v628 = vld [vmem:[%s348 + $0x10] sm:$0xf]
        %v629 = vld [vmem:[%s348 + $0x14] sm:$0xf]
        %v630 = vld [vmem:[%s348 + $0x18] sm:$0xf]
        %v631 = vld [vmem:[%s348 + $0x1c] sm:$0xf]
        %v632 = vld [vmem:[%s348 + $0x20] sm:$0xf]
        %v633 = vld [vmem:[%s348 + $0x24] sm:$0xf]
        %v634 = vld [vmem:[%s348 + $0x28] sm:$0xf]
        %v635 = vld [vmem:[%s348 + $0x2c] sm:$0xf]
        %v636 = vld [vmem:[%s348 + $0x30] sm:$0xf]
        %v637 = vld [vmem:[%s348 + $0x34] sm:$0xf]
        %v638 = vld [vmem:[%s348 + $0x38] sm:$0xf]
        %v639 = vld [vmem:[%s348 + $0x3c] sm:$0xf]
        %v640 = vld [vmem:[%s389] sm:$0x1]
        %v642 = vlaneseq
        %v643 = vshrl.u32 %v642, 7
        %v644 = vsub.s32 0, %v643
        %v645 = vrot.slane %v640, %v644
        %v663 = vunpack.c.l.b16 %v624
        %v664 = vunpack.c.l.b16 %v625
        %v665 = vunpack.c.l.b16 %v626
        %v666 = vunpack.c.l.b16 %v627
        %v667 = vunpack.c.l.b16 %v628
        %v668 = vunpack.c.l.b16 %v629
        %v669 = vunpack.c.l.b16 %v630
        %v670 = vunpack.c.l.b16 %v631
        %v671 = vunpack.c.l.b16 %v632
        %v672 = vunpack.c.l.b16 %v633
        %v673 = vunpack.c.l.b16 %v634
        %v674 = vunpack.c.l.b16 %v635
        %v675 = vunpack.c.l.b16 %v636
        %v676 = vunpack.c.l.b16 %v637
        %v677 = vunpack.c.l.b16 %v638
        %v678 = vunpack.c.l.b16 %v639
        %v679 = vpack.c.b16 %v664, %v663
        %v680 = vpack.c.b16 %v666, %v665
        %v681 = vpack.c.b16 %v668, %v667
        %v682 = vpack.c.b16 %v670, %v669
        %v683 = vpack.c.b16 %v672, %v671
        %v684 = vpack.c.b16 %v674, %v673
        %v685 = vpack.c.b16 %v676, %v675
        %v686 = vpack.c.b16 %v678, %v677
        %695 = vmatprep.subr.bf16.mxu0 0
        %696 = vmatpush1.bf16.msra.mxu0 %v679
        %697 = vmatprep.subr.bf16.mxu0 0
        %698 = vmatpush1.bf16.msra.mxu0 %v680
        %699 = vmatprep.subr.bf16.mxu0 0
        %700 = vmatpush1.bf16.msra.mxu0 %v681
        %701 = vmatprep.subr.bf16.mxu0 0
        %702 = vmatpush1.bf16.msra.mxu0 %v682
        %703 = vmatprep.subr.bf16.mxu0 0
        %704 = vmatpush1.bf16.msra.mxu0 %v683
        %705 = vmatprep.subr.bf16.mxu0 0
        %706 = vmatpush1.bf16.msra.mxu0 %v684
        %707 = vmatprep.subr.bf16.mxu0 0
        %708 = vmatpush1.bf16.msra.mxu0 %v685
        %709 = vmatprep.subr.bf16.mxu0 0
        %710 = vmatpush1.bf16.msra.mxu0 %v686
        %711 = vmatprep.subr.bf16.mxu0 0
        %712 = vmatpush1.bf16.msra.mxu0 0
        %713 = vmatprep.subr.bf16.mxu0 0
        %714 = vmatpush1.bf16.msra.mxu0 0
        %715 = vmatprep.subr.bf16.mxu0 0
        %716 = vmatpush1.bf16.msra.mxu0 0
        %717 = vmatprep.subr.bf16.mxu0 0
        %718 = vmatpush1.bf16.msra.mxu0 0
        %719 = vmatprep.subr.bf16.mxu0 0
        %720 = vmatpush1.bf16.msra.mxu0 0
        %721 = vmatprep.subr.bf16.mxu0 0
        %722 = vmatpush1.bf16.msra.mxu0 0
        %723 = vmatprep.subr.bf16.mxu0 0
        %724 = vmatpush1.bf16.msra.mxu0 0
        %725 = vmatprep.subr.bf16.mxu0 0
        %726 = vmatpush1.bf16.msra.mxu0 0
        %727 = vmatprep.mubr.bf16.mxu0 0
        %728 = vmatmul.mubr.bf16.gmra.mrb[0].mxu0 %v623
        %v729 = vpop.f32.mrb[0].mxu0
        %v730 = vadd.f32 %v645, %v729
        %v731 = vpop.f32.mrb[0].mxu0
        %v732 = vpop.f32.mrb[0].mxu0
        %v733 = vpop.f32.mrb[0].mxu0
        %734 = vdwg.mxu0
        %735 = vst [vmem:[%s386] sm:$0xff] %v730
        %s736 = sand.u32 %s212, 1
        %s737 = scalar_lea.sflag [#allocation5], %s736
        %s738 = sand.u32 %s212, 1
        %s739 = smul.addr %s738, 8
        %s740 = scalar_lea.vmem [#allocation11], %s739
        // Predicated region
        $region69: #{tpu_custom_call.1} parent=47 // pred_check
          %p741 = pneg %p222
        $region70: #{tpu_custom_call.1} parent=47 // pred_check_branch
          %743 = sbr.rel (%p741) target = $region72
        $region71: #{tpu_custom_call.1} parent=47 // pred_region
          %s745 = ssub.s32 128, 128
          %746 = vsyncadd %s737, %s745
          %s747 = smul.addr %s32, 3
          %s748 = sadd.s32 %s33, %s747
          %s749 = smul.addr %s748, 128
          %s750 = scalar_lea.hbm %s7, %s749
          %s752 = sshll.u32 %s740, 4
          %s753 = int_to_ptr.vmem [resolvable:$true] %s752
          %755 = dma.vmem_to_hbm [thread:$0]  %s753, 128, %s750, %s737
        $region72: #{tpu_custom_call.1} parent=47 // pred_fallthru
          _
      $region48: #{tpu_custom_call.1} parent=5 // pred_fallthru
        _
      %p756 = scmp.le.s32.totalorder 2, %s23
      // Predicated region
      $region73: #{tpu_custom_call.1} parent=5 // pred_check
        %p757 = pneg %p756
      $region74: #{tpu_custom_call.1} parent=5 // pred_check_branch
        %759 = sbr.rel (%p757) target = $region76
      $region75: #{tpu_custom_call.1} parent=5 // pred_region
        %s760 = ssub.s32 %s23, 2
        // Predicated region
        $region77: #{tpu_custom_call.1} parent=75 // pred_check
          %p761 = pneg %p228
        $region78: #{tpu_custom_call.1} parent=75 // pred_check_branch
          %763 = sbr.rel (%p761) target = $region80
        $region79: #{tpu_custom_call.1} parent=75 // pred_region
          %s764 = sand.u32 %s213, 1
          %s765 = scalar_lea.sflag [#allocation5], %s764
          %s766 = sand.u32 %s213, 1
          %s767 = smul.addr %s766, 8
          %s768 = scalar_lea.vmem [#allocation11], %s767
          %769 = dma.done %s765, 128
        $region80: #{tpu_custom_call.1} parent=75 // pred_fallthru
          _
      $region76: #{tpu_custom_call.1} parent=5 // pred_fallthru
        _
    $region6: #{tpu_custom_call.1} parent=1 // loop_footer
      %s27 = sadd.s32 1, %s23
    $region7: #{tpu_custom_call.1} parent=1 // loop_footer_branch
      %22 = sbr.rel target = $region3
    $region8: #{tpu_custom_call.1} parent=1 // loop_exit
      _
    %770 = vsyncpa [#allocation4], 1
    %s771 = scalar_lea.sflag [#allocation4], 1
    %772 = vsyncpa %s771, 1
    %773 = vsyncpa [#allocation7], 1
    %774 = vsyncpa [#allocation10], 1
    %s775 = scalar_lea.sflag [#allocation10], 1
    %776 = vsyncpa %s775, 1
    %777 = vsyncpa [#allocation5], 1
    %s778 = scalar_lea.sflag [#allocation5], 1
    %779 = vsyncpa %s778, 1

</llo_original>
